<compile_context>
chip_gen: v7x
topology: tpu7x:2x2x1
jax: 0.10.0
libtpu: 0.0.40
codegen_flags: <defaults>
</compile_context>

<pallas_src>
import jax
import jax.numpy as jnp
from jax.experimental import pallas as pl
from jax.experimental.pallas import tpu as pltpu


def _copy_kernel(x_hbm_ref, o_hbm_ref, sem):
    # Single DMA, no VMEM staging, no grid, no pipeline.
    cp = pltpu.make_async_copy(x_hbm_ref, o_hbm_ref, sem)
    cp.start()
    cp.wait()


def _identity_pallas(x2d):
    """Identity copy of a 2-D slab via one async DMA (refs stay in HBM)."""
    return pl.pallas_call(
        _copy_kernel,
        out_shape=jax.ShapeDtypeStruct(x2d.shape, x2d.dtype),
        in_specs=[pl.BlockSpec(memory_space=pl.ANY)],
        out_specs=pl.BlockSpec(memory_space=pl.ANY),
        scratch_shapes=[pltpu.SemaphoreType.DMA],
    )(x2d)


def _lane_dense_2d(x, max_cols=2048):
    """Reshape to (rows, cols) with the widest cols that is a multiple of 128
    while keeping rows a multiple of 8; graceful fallback for tiny inputs."""
    n = x.size
    cols = 128
    best_aligned = None
    best_any = None
    while cols <= min(n, max_cols) and n % cols == 0:
        rows = n // cols
        best_any = (rows, cols)
        if rows % 8 == 0:
            best_aligned = (rows, cols)
        cols *= 2
    shape = best_aligned or best_any or (1, n)
    return x.reshape(shape)


class UniT:
    """JAX/Pallas port of the (stub) PyTorch UniT module."""

    def __init__(self, in_dim, patch_size):
        # Reference __init__ creates no parameters.
        self.in_dim = in_dim
        self.patch_size = patch_size

    def forward(self):
        # Reference forward() is `pass` -> returns None.
        return None

    def __call__(self):
        return self.forward()


if __name__ == "__main__":
    # Deterministic small example input (NCHW), consistent with an
    # image/patch module signature (in_dim=4 channels, patch_size=4).
    key = jax.random.PRNGKey(0)
    B, C, H, W = 2, 4, 16, 16
    x = jax.random.normal(key, (B, C, H, W), dtype=jnp.float32)

    # Instantiate the (parameter-free) module and reproduce its forward.
    model = UniT(in_dim=C, patch_size=4)
    result = model()  # == None, matching the PyTorch stub exactly
    assert result is None

    # Exercise the Pallas kernel once: lane-dense slab (8, 256) for the
    # 2048-element example, copied by a single HBM-level DMA.
    x2d = _lane_dense_2d(x)
    identity = jax.jit(_identity_pallas)
    y2d = jax.block_until_ready(identity(x2d))
    y = y2d.reshape(B, C, H, W)

    # Sanity check: identity kernel must be exact.
    assert jnp.array_equal(y, x)

    print("KERNEL_OK")
</pallas_src>

<mosaic_0001>
module attributes {stable_mosaic.version = 11 : i64} {
  func.func @_copy_kernel(%arg0: memref<8x256xf32, #tpu.memory_space<any>>, %arg1: memref<8x256xf32, #tpu.memory_space<any>>, %arg2: memref<!tpu.dma_semaphore, #tpu.memory_space<semaphore_mem>>) attributes {dimension_semantics = [], scalar_prefetch = 0 : i64, scratch_operands = 1 : i64, tpu.core_type = #tpu.core_type<tc>} {
    tpu.enqueue_dma source(%arg0 : memref<8x256xf32, #tpu.memory_space<any>>) target(%arg1 : memref<8x256xf32, #tpu.memory_space<any>>) target_semaphore(%arg2 : memref<!tpu.dma_semaphore, #tpu.memory_space<semaphore_mem>>)
    tpu.wait_dma2 semaphore(%arg2 : memref<!tpu.dma_semaphore, #tpu.memory_space<semaphore_mem>>) src(%arg0 : memref<8x256xf32, #tpu.memory_space<any>>) dst(%arg1 : memref<8x256xf32, #tpu.memory_space<any>>)
    return
  }
}

</mosaic_0001>

<llo_original>
// kernel: _identity_pallas.1
$region0: #{_identity_pallas.1}
  #allocation0 [shape = 'u32[]', space=smem, size = 0x4, offset = 0x4, fixed_abs, tag = 'smem constant byte address 0x4 - core index']
  #allocation1 [shape = 'u32[144,128]{1,0:T(1,128)}', space=vmem, size = 0x12000, scoped, tag = 'internal scratch']
  #allocation2 [shape = 's32[1]{0}', space=sflag, size = 0x4, scoped, tag = 'scratch operand']
  #allocation3 [shape = 's32[]', space=sflag, size = 0x4, offset = 0, fixed_abs, tag = 'sflag constant byte address 0x0 - dummy sync flag']
  #allocation4 [shape = 'u32[0]{0}', space=smem, size = 0, offset = 0, fixed_abs, tag = 'smem constant byte address 0x0 - null']
  %s0 = inlined_call_operand.hbm [shape: f32[8,256], index: 0, kind: input, shape index: {}]
  %s1 = inlined_call_operand.hbm [shape: f32[8,256], index: 1, kind: output, shape index: {}]
  %s2 = sld [smem:[#allocation0]]
  $region2: #{_identity_pallas.1} parent=0
    _
  %s4 = ssub.s32 1, %s2
  %s5 = scalar_select 0, %s4, %s2
  %s7 = sshll.u32 1, 14
  %s8 = sxor.u32 4294967295, %s7
  %s11 = sshll.u32 3, 24
  %s12 = sxor.u32 4294967295, %s11
  %s13 = sand.u32 0, %s12
  %s15 = sor.u32 %s13, 0
  %18 = dma.general %s0, 256, %s1, [#allocation2], [#allocation3], [#allocation4], %s15, 0
  %s19 = smul.u32 8, 1
  %s20 = smul.u32 %s19, 2
  %s21 = sshll.u32 %s20, 4
  %22 = dma.done [#allocation2], %s21
  %23 = vsyncmov [#allocation2]
  %s24 = vpop.sfrf %23
  %p25 = scmp.eq.s32.totalorder %s24, 0
  %p26 = pneg %p25
  %28 = shalt.err (%p26)

</llo_original>
